<compile_context>
chip_gen: v7x
topology: tpu7x:2x2x1
jax: 0.10.0
libtpu: 0.0.40
codegen_flags: <defaults>
</compile_context>

<pallas_src>
import jax
import jax.numpy as jnp
from jax.experimental import pallas as pl
from jax.experimental.pallas import tpu as pltpu

# ---------------------------------------------------------------------------
# Model hyperparameters (synthetic, matching Mapper(nfeat, nviews).__init__)
# ---------------------------------------------------------------------------
NFEAT = 8
NVIEWS = 3
INPUT_SIZE = (NVIEWS + 1) * NFEAT          # 32
H1 = 256
H2 = 128
OUT = 1

TB_MAX = 4096                              # batch rows (lanes) per grid step


def _round_up(x, m):
    return (x + m - 1) // m * m


def _choose_tb(batch):
    """Tile size: >=128 lanes, <=TB_MAX, and >=2 tiles for mid/large batches
    so v7x's two TensorCores both get work via the "parallel" grid axis."""
    if batch <= 256:
        return 128
    return min(TB_MAX, _round_up(pl.cdiv(batch, 2), 128))


def mapper_kernel(x_ref, w1_ref, b1_ref, w2_ref, b2_ref, w3_ref, b3_ref, o_ref):
    """One batch tile of the MLP, fully transposed (batch on the lane axis).

    x_ref : (INPUT_SIZE, TB)  bf16
    w1_ref: (H1, INPUT_SIZE)  bf16   b1_ref: (H1, 1)  f32
    w2_ref: (H2, H1)          bf16   b2_ref: (H2, 1)  f32
    w3_ref: (H2, 1)           f32    b3_ref: (OUT, 1) f32
    o_ref : (OUT, TB)         f32    (lane-dense store)
    """
    xT = x_ref[...]

    # fc1 + bias + relu, single f32->bf16 pack (f32 accumulation on the MXU).
    h1 = jnp.maximum(
        jnp.dot(w1_ref[...], xT, preferred_element_type=jnp.float32)
        + b1_ref[...], 0.0).astype(jnp.bfloat16)                  # (H1, TB)
    # dropout: eval mode -> identity

    # fc2 + bias + relu, kept f32 (consumed by the VPU fc3 below).
    h2 = jnp.maximum(
        jnp.dot(w2_ref[...], h1, preferred_element_type=jnp.float32)
        + b2_ref[...], 0.0)                                       # (H2, TB) f32
    # dropout: eval mode -> identity

    # fc3 off the MXU: VPU multiply + sublane (axis=0) reduction on the XLU.
    logits = jnp.sum(h2 * w3_ref[...], axis=0, keepdims=True) + b3_ref[...]
    o_ref[...] = jax.nn.sigmoid(logits)                           # (1, TB)


@jax.jit
def mapper_forward(x, params):
    """x: any shape whose elements flatten to (B, INPUT_SIZE) row-major."""
    w1, b1, w2, b2, w3, b3 = params
    x2d = x.reshape(-1, INPUT_SIZE)
    B = x2d.shape[0]

    tb = _choose_tb(B)
    num_tiles = pl.cdiv(B, tb)
    Bp = num_tiles * tb

    # Under jit, pad + bf16 cast + transpose fuse into a single HBM pass.
    xT = jnp.pad(x2d, ((0, Bp - B), (0, 0))).astype(jnp.bfloat16).T  # (IN, Bp)

    const = lambda shape: pl.BlockSpec(shape, lambda i: (0, 0))   # stays resident

    flops = 2 * B * (INPUT_SIZE * H1 + H1 * H2 + H2 * OUT)
    bytes_accessed = (xT.size * 2                       # bf16 x stream
                      + (w1.size + w2.size) * 2 + w3.size * 4
                      + (b1.size + b2.size + b3.size) * 4
                      + Bp * 4)                          # f32 output

    out = pl.pallas_call(
        mapper_kernel,
        out_shape=jax.ShapeDtypeStruct((OUT, Bp), jnp.float32),
        grid=(num_tiles,),
        in_specs=[
            pl.BlockSpec((INPUT_SIZE, tb), lambda i: (0, i)),
            const((H1, INPUT_SIZE)), const((H1, 1)),
            const((H2, H1)),         const((H2, 1)),
            const((H2, 1)),          const((OUT, 1)),
        ],
        out_specs=pl.BlockSpec((OUT, tb), lambda i: (0, i)),
        compiler_params=pltpu.CompilerParams(
            dimension_semantics=("parallel",)),
        cost_estimate=pl.CostEstimate(flops=flops,
                                      transcendentals=B,
                                      bytes_accessed=bytes_accessed),
    )(
        xT,
        w1.astype(jnp.bfloat16), b1,
        w2.astype(jnp.bfloat16), b2,
        w3.reshape(H2, OUT),     b3,      # w3 as (H2, 1) f32 column for VPU fc3
    )

    return out[0, :B].reshape(B, OUT)


def init_params(key):
    """Deterministic synthetic params in PyTorch layout: W (out,in), b (out,1)."""
    k1, k2, k3, k4, k5, k6 = jax.random.split(key, 6)

    def lin(kw, kb, fan_in, fan_out):
        bound = 1.0 / jnp.sqrt(fan_in)
        w = jax.random.uniform(kw, (fan_out, fan_in), jnp.float32, -bound, bound)
        b = jax.random.uniform(kb, (fan_out, 1), jnp.float32, -bound, bound)
        return w, b

    w1, b1 = lin(k1, k2, INPUT_SIZE, H1)
    w2, b2 = lin(k3, k4, H1, H2)
    w3, b3 = lin(k5, k6, H2, OUT)
    return (w1, b1, w2, b2, w3, b3)


def reference_forward(x, params):
    """Pure-JAX f32 reference for correctness check."""
    w1, b1, w2, b2, w3, b3 = params
    h = x.reshape(-1, INPUT_SIZE)
    h = jnp.maximum(h @ w1.T + b1.T, 0.0)
    h = jnp.maximum(h @ w2.T + b2.T, 0.0)
    return jax.nn.sigmoid(h @ w3.T + b3.T)


if __name__ == "__main__":
    key = jax.random.PRNGKey(0)
    k_param, k_x1, k_x2 = jax.random.split(key, 3)

    params = init_params(k_param)

    # Small test: batch of 2 samples x 4 "items", feature dim = (nviews+1)*nfeat.
    x_small = jax.random.normal(k_x1, (2, 4, INPUT_SIZE), jnp.float32)
    out_small = jax.block_until_ready(mapper_forward(x_small, params))
    ref_small = reference_forward(x_small, params)
    assert out_small.shape == (8, 1), out_small.shape
    # bf16 MXU operands with f32 accumulation -> relaxed tolerance vs f32 ref.
    assert jnp.allclose(out_small, ref_small, atol=2e-2, rtol=2e-2), "small mismatch"

    # Multi-tile test (2 tiles of 256 lanes, padded ragged batch of 300).
    x_multi = jax.random.normal(k_x2, (300, INPUT_SIZE), jnp.float32)
    out_multi = jax.block_until_ready(mapper_forward(x_multi, params))
    ref_multi = reference_forward(x_multi, params)
    assert out_multi.shape == (300, 1), out_multi.shape
    assert jnp.allclose(out_multi, ref_multi, atol=2e-2, rtol=2e-2), "multi mismatch"

    print("KERNEL_OK")
</pallas_src>

<mosaic_0001>
module attributes {stable_mosaic.version = 11 : i64} {
  func.func @mapper_kernel(%arg0: i32, %arg1: memref<32x128xbf16, #tpu.memory_space<vmem>>, %arg2: memref<256x32xbf16, #tpu.memory_space<vmem>>, %arg3: memref<256x1xf32, #tpu.memory_space<vmem>>, %arg4: memref<128x256xbf16, #tpu.memory_space<vmem>>, %arg5: memref<128x1xf32, #tpu.memory_space<vmem>>, %arg6: memref<128x1xf32, #tpu.memory_space<vmem>>, %arg7: memref<1x1xf32, #tpu.memory_space<vmem>>, %arg8: memref<1x128xf32, #tpu.memory_space<vmem>>) attributes {dimension_semantics = [#tpu.dimension_semantics<parallel>], iteration_bounds = array<i64: 1>, scalar_prefetch = 0 : i64, scratch_operands = 0 : i64, tpu.core_type = #tpu.core_type<tc>, window_params = [{transform_indices = @transform_0, window_bounds = array<i64: 32, 128>}, {pipeline_mode = #tpu.pipeline_mode<synchronous>, transform_indices = @transform_1, window_bounds = array<i64: 256, 32>}, {pipeline_mode = #tpu.pipeline_mode<synchronous>, transform_indices = @transform_2, window_bounds = array<i64: 256, 1>}, {pipeline_mode = #tpu.pipeline_mode<synchronous>, transform_indices = @transform_3, window_bounds = array<i64: 128, 256>}, {pipeline_mode = #tpu.pipeline_mode<synchronous>, transform_indices = @transform_4, window_bounds = array<i64: 128, 1>}, {pipeline_mode = #tpu.pipeline_mode<synchronous>, transform_indices = @transform_5, window_bounds = array<i64: 128, 1>}, {pipeline_mode = #tpu.pipeline_mode<synchronous>, transform_indices = @transform_6, window_bounds = array<i64: 1, 1>}, {transform_indices = @transform_7, window_bounds = array<i64: 1, 128>}]} {
    %c0 = arith.constant 0 : index
    %c0_0 = arith.constant 0 : index
    %0 = vector.load %arg1[%c0, %c0_0] : memref<32x128xbf16, #tpu.memory_space<vmem>>, vector<32x128xbf16>
    %c0_1 = arith.constant 0 : index
    %c0_2 = arith.constant 0 : index
    %1 = vector.load %arg2[%c0_1, %c0_2] : memref<256x32xbf16, #tpu.memory_space<vmem>>, vector<256x32xbf16>
    %cst = arith.constant dense<0.000000e+00> : vector<256x128xf32>
    %2 = tpu.matmul %1, %0, %cst {dimension_numbers = #tpu.dot_dimension_numbers<[1], [0], [0], [1], [0, 0, 1, 1], [], []>} : vector<256x32xbf16>, vector<32x128xbf16>, vector<256x128xf32> -> vector<256x128xf32>
    %c0_3 = arith.constant 0 : index
    %c0_4 = arith.constant 0 : index
    %3 = vector.load %arg3[%c0_3, %c0_4] : memref<256x1xf32, #tpu.memory_space<vmem>>, vector<256x1xf32>
    %4 = vector.broadcast %3 : vector<256x1xf32> to vector<256x128xf32>
    %5 = arith.addf %2, %4 : vector<256x128xf32>
    %cst_5 = arith.constant 0.000000e+00 : f32
    %6 = vector.broadcast %cst_5 : f32 to vector<256x128xf32>
    %7 = arith.maximumf %5, %6 : vector<256x128xf32>
    %8 = arith.truncf %7 : vector<256x128xf32> to vector<256x128xbf16>
    %c0_6 = arith.constant 0 : index
    %c0_7 = arith.constant 0 : index
    %9 = vector.load %arg4[%c0_6, %c0_7] : memref<128x256xbf16, #tpu.memory_space<vmem>>, vector<128x256xbf16>
    %cst_8 = arith.constant dense<0.000000e+00> : vector<128x128xf32>
    %10 = tpu.matmul %9, %8, %cst_8 {dimension_numbers = #tpu.dot_dimension_numbers<[1], [0], [0], [1], [0, 0, 1, 1], [], []>} : vector<128x256xbf16>, vector<256x128xbf16>, vector<128x128xf32> -> vector<128x128xf32>
    %c0_9 = arith.constant 0 : index
    %c0_10 = arith.constant 0 : index
    %11 = vector.load %arg5[%c0_9, %c0_10] : memref<128x1xf32, #tpu.memory_space<vmem>>, vector<128x1xf32>
    %12 = vector.broadcast %11 : vector<128x1xf32> to vector<128x128xf32>
    %13 = arith.addf %10, %12 : vector<128x128xf32>
    %cst_11 = arith.constant 0.000000e+00 : f32
    %14 = vector.broadcast %cst_11 : f32 to vector<128x128xf32>
    %15 = arith.maximumf %13, %14 : vector<128x128xf32>
    %c0_12 = arith.constant 0 : index
    %c0_13 = arith.constant 0 : index
    %16 = vector.load %arg6[%c0_12, %c0_13] : memref<128x1xf32, #tpu.memory_space<vmem>>, vector<128x1xf32>
    %17 = vector.broadcast %16 : vector<128x1xf32> to vector<128x128xf32>
    %18 = arith.mulf %15, %17 : vector<128x128xf32>
    %cst_14 = arith.constant dense<0.000000e+00> : vector<128xf32>
    %19 = vector.multi_reduction <add>, %18, %cst_14 [0] : vector<128x128xf32> to vector<128xf32>
    %20 = vector.shape_cast %19 : vector<128xf32> to vector<1x128xf32>
    %c0_15 = arith.constant 0 : index
    %c0_16 = arith.constant 0 : index
    %21 = vector.load %arg7[%c0_15, %c0_16] : memref<1x1xf32, #tpu.memory_space<vmem>>, vector<1x1xf32>
    %22 = vector.broadcast %21 : vector<1x1xf32> to vector<1x128xf32>
    %23 = arith.addf %20, %22 : vector<1x128xf32>
    %24 = arith.negf %23 : vector<1x128xf32>
    %25 = math.exp %24 : vector<1x128xf32>
    %cst_17 = arith.constant 1.000000e+00 : f32
    %26 = vector.broadcast %cst_17 : f32 to vector<1x128xf32>
    %27 = arith.addf %26, %25 : vector<1x128xf32>
    %28 = arith.divf %26, %27 : vector<1x128xf32>
    %c0_18 = arith.constant 0 : index
    %c0_19 = arith.constant 0 : index
    %29 = vector.load %arg8[%c0_18, %c0_19] : memref<1x128xf32, #tpu.memory_space<vmem>>, vector<1x128xf32>
    tpu.vector_store %arg8[%c0_18, %c0_19], %28 {strides = array<i32>} : memref<1x128xf32, #tpu.memory_space<vmem>>, vector<1x128xf32>,
    return
  }
  func.func @transform_0(%arg0: i32) -> (i32, i32) {
    %c0_i32 = arith.constant 0 : i32
    %c0_i32_0 = arith.constant 0 : i32
    return %c0_i32, %arg0 : i32, i32
  }
  func.func @transform_1(%arg0: i32) -> (i32, i32) {
    %c0_i32 = arith.constant 0 : i32
    %c0_i32_0 = arith.constant 0 : i32
    %c0_i32_1 = arith.constant 0 : i32
    return %c0_i32, %c0_i32_0 : i32, i32
  }
  func.func @transform_2(%arg0: i32) -> (i32, i32) {
    %c0_i32 = arith.constant 0 : i32
    %c0_i32_0 = arith.constant 0 : i32
    %c0_i32_1 = arith.constant 0 : i32
    return %c0_i32, %c0_i32_0 : i32, i32
  }
  func.func @transform_3(%arg0: i32) -> (i32, i32) {
    %c0_i32 = arith.constant 0 : i32
    %c0_i32_0 = arith.constant 0 : i32
    %c0_i32_1 = arith.constant 0 : i32
    return %c0_i32, %c0_i32_0 : i32, i32
  }
  func.func @transform_4(%arg0: i32) -> (i32, i32) {
    %c0_i32 = arith.constant 0 : i32
    %c0_i32_0 = arith.constant 0 : i32
    %c0_i32_1 = arith.constant 0 : i32
    return %c0_i32, %c0_i32_0 : i32, i32
  }
  func.func @transform_5(%arg0: i32) -> (i32, i32) {
    %c0_i32 = arith.constant 0 : i32
    %c0_i32_0 = arith.constant 0 : i32
    %c0_i32_1 = arith.constant 0 : i32
    return %c0_i32, %c0_i32_0 : i32, i32
  }
  func.func @transform_6(%arg0: i32) -> (i32, i32) {
    %c0_i32 = arith.constant 0 : i32
    %c0_i32_0 = arith.constant 0 : i32
    %c0_i32_1 = arith.constant 0 : i32
    return %c0_i32, %c0_i32_0 : i32, i32
  }
  func.func @transform_7(%arg0: i32) -> (i32, i32) {
    %c0_i32 = arith.constant 0 : i32
    %c0_i32_0 = arith.constant 0 : i32
    return %c0_i32, %arg0 : i32, i32
  }
}

</mosaic_0001>

<llo_original>
// kernel: mapper_forward.1
$region0: #{mapper_forward.1}
  #allocation0 [shape = 'u32[]', space=smem, size = 0x4, offset = 0x4, fixed_abs, tag = 'smem constant byte address 0x4 - core index']
  #allocation1 [shape = 'u32[144,128]{1,0:T(1,128)}', space=vmem, size = 0x12000, scoped, tag = 'internal scratch']
  #allocation2 [shape = 'f32[1,1]{1,0:T(1,128)S(1)}', space=vmem, size = 0x200, scoped, tag = 'scoped memory for mapper_forward.1']
  %s0 = inlined_call_operand.vmem [shape: bf16[32,128], index: 0, kind: input, shape index: {}]
  %s1 = inlined_call_operand.vmem [shape: bf16[256,32], index: 1, kind: input, shape index: {}]
  %s2 = inlined_call_operand.vmem [shape: f32[256,1], index: 2, kind: input, shape index: {}]
  %s3 = inlined_call_operand.vmem [shape: bf16[128,256], index: 3, kind: input, shape index: {}]
  %s4 = inlined_call_operand.vmem [shape: f32[128,1], index: 4, kind: input, shape index: {}]
  %s5 = inlined_call_operand.vmem [shape: f32[128,1], index: 5, kind: input, shape index: {}]
  %s6 = inlined_call_operand.<no memory space> [shape: f32[1,1], index: 6, kind: input, shape index: {}]
  %s7 = inlined_call_operand.vmem [shape: f32[1,128], index: 7, kind: output, shape index: {}]
  %s8 = sld [smem:[#allocation0]]
  $region38: #{mapper_forward.1} parent=0
    _
  %s10 = ssub.s32 1, %s8
  %s11 = scalar_select 0, %s10, %s8
  %v12 = vstv %s6
  %13 = vst [vmem:[#allocation2] sm:$0x1] %v12
  // Predicated region
  $region2: #{mapper_forward.1} parent=0 // pred_check
    _
  $region3: #{mapper_forward.1} parent=0 // pred_check_branch
    %15 = sbr.rel (0) target = $region5
  $region4: #{mapper_forward.1} parent=0 // pred_region
    _
  $region5: #{mapper_forward.1} parent=0 // pred_fallthru
    _
  // Predicated region
  $region6: #{mapper_forward.1} parent=0 // pred_check
    _
  $region7: #{mapper_forward.1} parent=0 // pred_check_branch
    %17 = sbr.rel (0) target = $region9
  $region8: #{mapper_forward.1} parent=0 // pred_region
    _
  $region9: #{mapper_forward.1} parent=0 // pred_fallthru
    _
  // Predicated region
  $region10: #{mapper_forward.1} parent=0 // pred_check
    _
  $region11: #{mapper_forward.1} parent=0 // pred_check_branch
    %19 = sbr.rel (0) target = $region13
  $region12: #{mapper_forward.1} parent=0 // pred_region
    _
  $region13: #{mapper_forward.1} parent=0 // pred_fallthru
    _
  // Predicated region
  $region14: #{mapper_forward.1} parent=0 // pred_check
    _
  $region15: #{mapper_forward.1} parent=0 // pred_check_branch
    %21 = sbr.rel (0) target = $region17
  $region16: #{mapper_forward.1} parent=0 // pred_region
    _
  $region17: #{mapper_forward.1} parent=0 // pred_fallthru
    _
  // Predicated region
  $region18: #{mapper_forward.1} parent=0 // pred_check
    _
  $region19: #{mapper_forward.1} parent=0 // pred_check_branch
    %23 = sbr.rel (0) target = $region21
  $region20: #{mapper_forward.1} parent=0 // pred_region
    _
  $region21: #{mapper_forward.1} parent=0 // pred_fallthru
    _
  // Predicated region
  $region22: #{mapper_forward.1} parent=0 // pred_check
    _
  $region23: #{mapper_forward.1} parent=0 // pred_check_branch
    %25 = sbr.rel (0) target = $region25
  $region24: #{mapper_forward.1} parent=0 // pred_region
    _
  $region25: #{mapper_forward.1} parent=0 // pred_fallthru
    _
  // Predicated region
  $region26: #{mapper_forward.1} parent=0 // pred_check
    _
  $region27: #{mapper_forward.1} parent=0 // pred_check_branch
    %27 = sbr.rel (0) target = $region29
  $region28: #{mapper_forward.1} parent=0 // pred_region
    _
  $region29: #{mapper_forward.1} parent=0 // pred_fallthru
    _
  %v29 = vld [vmem:[%s0] sm:$0xf]
  %v30 = vld [vmem:[%s0 + $0x4] sm:$0xf]
  %v31 = vld [vmem:[%s0 + $0x8] sm:$0xf]
  %v32 = vld [vmem:[%s0 + $0xc] sm:$0xf]
  %v33 = vld [vmem:[%s1] sm:$0xf]
  %v34 = vld [vmem:[%s1 + $0x4] sm:$0xf]
  %v35 = vld [vmem:[%s1 + $0x8] sm:$0xf]
  %v36 = vld [vmem:[%s1 + $0xc] sm:$0xf]
  %v37 = vld [vmem:[%s1 + $0x10] sm:$0xf]
  %v38 = vld [vmem:[%s1 + $0x14] sm:$0xf]
  %v39 = vld [vmem:[%s1 + $0x18] sm:$0xf]
  %v40 = vld [vmem:[%s1 + $0x1c] sm:$0xf]
  %v41 = vld [vmem:[%s1 + $0x20] sm:$0xf]
  %v42 = vld [vmem:[%s1 + $0x24] sm:$0xf]
  %v43 = vld [vmem:[%s1 + $0x28] sm:$0xf]
  %v44 = vld [vmem:[%s1 + $0x2c] sm:$0xf]
  %v45 = vld [vmem:[%s1 + $0x30] sm:$0xf]
  %v46 = vld [vmem:[%s1 + $0x34] sm:$0xf]
  %v47 = vld [vmem:[%s1 + $0x38] sm:$0xf]
  %v48 = vld [vmem:[%s1 + $0x3c] sm:$0xf]
  %v49 = vld [vmem:[%s1 + $0x40] sm:$0xf]
  %v50 = vld [vmem:[%s1 + $0x44] sm:$0xf]
  %v51 = vld [vmem:[%s1 + $0x48] sm:$0xf]
  %v52 = vld [vmem:[%s1 + $0x4c] sm:$0xf]
  %v53 = vld [vmem:[%s1 + $0x50] sm:$0xf]
  %v54 = vld [vmem:[%s1 + $0x54] sm:$0xf]
  %v55 = vld [vmem:[%s1 + $0x58] sm:$0xf]
  %v56 = vld [vmem:[%s1 + $0x5c] sm:$0xf]
  %v57 = vld [vmem:[%s1 + $0x60] sm:$0xf]
  %v58 = vld [vmem:[%s1 + $0x64] sm:$0xf]
  %v59 = vld [vmem:[%s1 + $0x68] sm:$0xf]
  %v60 = vld [vmem:[%s1 + $0x6c] sm:$0xf]
  %v61 = vld [vmem:[%s1 + $0x70] sm:$0xf]
  %v62 = vld [vmem:[%s1 + $0x74] sm:$0xf]
  %v63 = vld [vmem:[%s1 + $0x78] sm:$0xf]
  %v64 = vld [vmem:[%s1 + $0x7c] sm:$0xf]
  %v65 = vld [vmem:[%s2] sm:$0xff]
  %v66 = vld [vmem:[%s2 + $0x8] sm:$0xff]
  %v67 = vld [vmem:[%s2 + $0x10] sm:$0xff]
  %v68 = vld [vmem:[%s2 + $0x18] sm:$0xff]
  %v69 = vld [vmem:[%s2 + $0x20] sm:$0xff]
  %v70 = vld [vmem:[%s2 + $0x28] sm:$0xff]
  %v71 = vld [vmem:[%s2 + $0x30] sm:$0xff]
  %v72 = vld [vmem:[%s2 + $0x38] sm:$0xff]
  %v73 = vld [vmem:[%s2 + $0x40] sm:$0xff]
  %v74 = vld [vmem:[%s2 + $0x48] sm:$0xff]
  %v75 = vld [vmem:[%s2 + $0x50] sm:$0xff]
  %v76 = vld [vmem:[%s2 + $0x58] sm:$0xff]
  %v77 = vld [vmem:[%s2 + $0x60] sm:$0xff]
  %v78 = vld [vmem:[%s2 + $0x68] sm:$0xff]
  %v79 = vld [vmem:[%s2 + $0x70] sm:$0xff]
  %v80 = vld [vmem:[%s2 + $0x78] sm:$0xff]
  %v81 = vld [vmem:[%s2 + $0x80] sm:$0xff]
  %v82 = vld [vmem:[%s2 + $0x88] sm:$0xff]
  %v83 = vld [vmem:[%s2 + $0x90] sm:$0xff]
  %v84 = vld [vmem:[%s2 + $0x98] sm:$0xff]
  %v85 = vld [vmem:[%s2 + $0xa0] sm:$0xff]
  %v86 = vld [vmem:[%s2 + $0xa8] sm:$0xff]
  %v87 = vld [vmem:[%s2 + $0xb0] sm:$0xff]
  %v88 = vld [vmem:[%s2 + $0xb8] sm:$0xff]
  %v89 = vld [vmem:[%s2 + $0xc0] sm:$0xff]
  %v90 = vld [vmem:[%s2 + $0xc8] sm:$0xff]
  %v91 = vld [vmem:[%s2 + $0xd0] sm:$0xff]
  %v92 = vld [vmem:[%s2 + $0xd8] sm:$0xff]
  %v93 = vld [vmem:[%s2 + $0xe0] sm:$0xff]
  %v94 = vld [vmem:[%s2 + $0xe8] sm:$0xff]
  %v95 = vld [vmem:[%s2 + $0xf0] sm:$0xff]
  %v96 = vld [vmem:[%s2 + $0xf8] sm:$0xff]
  %98 = vset.pattern.permute.xlu0 0
  %99 = vperm.xlu0 %98, %v65
  %v100 = vpop.permute.xlu0 %99
  %103 = vset.pattern.permute.xlu0 0
  %104 = vperm.xlu0 %103, %v66
  %v105 = vpop.permute.xlu0 %104
  %108 = vset.pattern.permute.xlu0 0
  %109 = vperm.xlu0 %108, %v67
  %v110 = vpop.permute.xlu0 %109
  %113 = vset.pattern.permute.xlu0 0
  %114 = vperm.xlu0 %113, %v68
  %v115 = vpop.permute.xlu0 %114
  %118 = vset.pattern.permute.xlu0 0
  %119 = vperm.xlu0 %118, %v69
  %v120 = vpop.permute.xlu0 %119
  %123 = vset.pattern.permute.xlu0 0
  %124 = vperm.xlu0 %123, %v70
  %v125 = vpop.permute.xlu0 %124
  %128 = vset.pattern.permute.xlu0 0
  %129 = vperm.xlu0 %128, %v71
  %v130 = vpop.permute.xlu0 %129
  %133 = vset.pattern.permute.xlu0 0
  %134 = vperm.xlu0 %133, %v72
  %v135 = vpop.permute.xlu0 %134
  %138 = vset.pattern.permute.xlu0 0
  %139 = vperm.xlu0 %138, %v73
  %v140 = vpop.permute.xlu0 %139
  %143 = vset.pattern.permute.xlu0 0
  %144 = vperm.xlu0 %143, %v74
  %v145 = vpop.permute.xlu0 %144
  %148 = vset.pattern.permute.xlu0 0
  %149 = vperm.xlu0 %148, %v75
  %v150 = vpop.permute.xlu0 %149
  %153 = vset.pattern.permute.xlu0 0
  %154 = vperm.xlu0 %153, %v76
  %v155 = vpop.permute.xlu0 %154
  %158 = vset.pattern.permute.xlu0 0
  %159 = vperm.xlu0 %158, %v77
  %v160 = vpop.permute.xlu0 %159
  %163 = vset.pattern.permute.xlu0 0
  %164 = vperm.xlu0 %163, %v78
  %v165 = vpop.permute.xlu0 %164
  %168 = vset.pattern.permute.xlu0 0
  %169 = vperm.xlu0 %168, %v79
  %v170 = vpop.permute.xlu0 %169
  %173 = vset.pattern.permute.xlu0 0
  %174 = vperm.xlu0 %173, %v80
  %v175 = vpop.permute.xlu0 %174
  %178 = vset.pattern.permute.xlu0 0
  %179 = vperm.xlu0 %178, %v81
  %v180 = vpop.permute.xlu0 %179
  %183 = vset.pattern.permute.xlu0 0
  %184 = vperm.xlu0 %183, %v82
  %v185 = vpop.permute.xlu0 %184
  %188 = vset.pattern.permute.xlu0 0
  %189 = vperm.xlu0 %188, %v83
  %v190 = vpop.permute.xlu0 %189
  %193 = vset.pattern.permute.xlu0 0
  %194 = vperm.xlu0 %193, %v84
  %v195 = vpop.permute.xlu0 %194
  %198 = vset.pattern.permute.xlu0 0
  %199 = vperm.xlu0 %198, %v85
  %v200 = vpop.permute.xlu0 %199
  %203 = vset.pattern.permute.xlu0 0
  %204 = vperm.xlu0 %203, %v86
  %v205 = vpop.permute.xlu0 %204
  %208 = vset.pattern.permute.xlu0 0
  %209 = vperm.xlu0 %208, %v87
  %v210 = vpop.permute.xlu0 %209
  %213 = vset.pattern.permute.xlu0 0
  %214 = vperm.xlu0 %213, %v88
  %v215 = vpop.permute.xlu0 %214
  %218 = vset.pattern.permute.xlu0 0
  %219 = vperm.xlu0 %218, %v89
  %v220 = vpop.permute.xlu0 %219
  %223 = vset.pattern.permute.xlu0 0
  %224 = vperm.xlu0 %223, %v90
  %v225 = vpop.permute.xlu0 %224
  %228 = vset.pattern.permute.xlu0 0
  %229 = vperm.xlu0 %228, %v91
  %v230 = vpop.permute.xlu0 %229
  %233 = vset.pattern.permute.xlu0 0
  %234 = vperm.xlu0 %233, %v92
  %v235 = vpop.permute.xlu0 %234
  %238 = vset.pattern.permute.xlu0 0
  %239 = vperm.xlu0 %238, %v93
  %v240 = vpop.permute.xlu0 %239
  %243 = vset.pattern.permute.xlu0 0
  %244 = vperm.xlu0 %243, %v94
  %v245 = vpop.permute.xlu0 %244
  %248 = vset.pattern.permute.xlu0 0
  %249 = vperm.xlu0 %248, %v95
  %v250 = vpop.permute.xlu0 %249
  %253 = vset.pattern.permute.xlu0 0
  %254 = vperm.xlu0 %253, %v96
  %v255 = vpop.permute.xlu0 %254
  %v289 = vunpack.c.l.b16 %v33
  %v290 = vunpack.c.l.b16 %v34
  %v291 = vunpack.c.l.b16 %v35
  %v292 = vunpack.c.l.b16 %v36
  %v293 = vunpack.c.l.b16 %v37
  %v294 = vunpack.c.l.b16 %v38
  %v295 = vunpack.c.l.b16 %v39
  %v296 = vunpack.c.l.b16 %v40
  %v297 = vunpack.c.l.b16 %v41
  %v298 = vunpack.c.l.b16 %v42
  %v299 = vunpack.c.l.b16 %v43
  %v300 = vunpack.c.l.b16 %v44
  %v301 = vunpack.c.l.b16 %v45
  %v302 = vunpack.c.l.b16 %v46
  %v303 = vunpack.c.l.b16 %v47
  %v304 = vunpack.c.l.b16 %v48
  %v305 = vunpack.c.l.b16 %v49
  %v306 = vunpack.c.l.b16 %v50
  %v307 = vunpack.c.l.b16 %v51
  %v308 = vunpack.c.l.b16 %v52
  %v309 = vunpack.c.l.b16 %v53
  %v310 = vunpack.c.l.b16 %v54
  %v311 = vunpack.c.l.b16 %v55
  %v312 = vunpack.c.l.b16 %v56
  %v313 = vunpack.c.l.b16 %v57
  %v314 = vunpack.c.l.b16 %v58
  %v315 = vunpack.c.l.b16 %v59
  %v316 = vunpack.c.l.b16 %v60
  %v317 = vunpack.c.l.b16 %v61
  %v318 = vunpack.c.l.b16 %v62
  %v319 = vunpack.c.l.b16 %v63
  %v320 = vunpack.c.l.b16 %v64
  %v321 = vpack.c.b16 %v290, %v289
  %v322 = vpack.c.b16 %v292, %v291
  %v323 = vpack.c.b16 %v294, %v293
  %v324 = vpack.c.b16 %v296, %v295
  %v325 = vpack.c.b16 %v298, %v297
  %v326 = vpack.c.b16 %v300, %v299
  %v327 = vpack.c.b16 %v302, %v301
  %v328 = vpack.c.b16 %v304, %v303
  %v329 = vpack.c.b16 %v306, %v305
  %v330 = vpack.c.b16 %v308, %v307
  %v331 = vpack.c.b16 %v310, %v309
  %v332 = vpack.c.b16 %v312, %v311
  %v333 = vpack.c.b16 %v314, %v313
  %v334 = vpack.c.b16 %v316, %v315
  %v335 = vpack.c.b16 %v318, %v317
  %v336 = vpack.c.b16 %v320, %v319
  %v341 = vunpack.c.l.b16 %v29
  %v342 = vunpack.c.l.b16 %v30
  %v343 = vunpack.c.l.b16 %v31
  %v344 = vunpack.c.l.b16 %v32
  %v345 = vpack.c.b16 %v342, %v341
  %v346 = vpack.c.b16 %v344, %v343
  %vm349 = vcmask 261120
  %v351 = vsel %vm349, %v321, 0
  %v354 = vsel %vm349, %v322, 0
  %v357 = vsel %vm349, %v323, 0
  %v360 = vsel %vm349, %v324, 0
  %v363 = vsel %vm349, %v325, 0
  %v366 = vsel %vm349, %v326, 0
  %v369 = vsel %vm349, %v327, 0
  %v372 = vsel %vm349, %v328, 0
  %v375 = vsel %vm349, %v329, 0
  %v378 = vsel %vm349, %v330, 0
  %v381 = vsel %vm349, %v331, 0
  %v384 = vsel %vm349, %v332, 0
  %v387 = vsel %vm349, %v333, 0
  %v390 = vsel %vm349, %v334, 0
  %v393 = vsel %vm349, %v335, 0
  %v396 = vsel %vm349, %v336, 0
  %398 = vmatprep.subr.bf16.mxu0 0
  %399 = vmatpush1.bf16.msra.mxu0 %v345
  %400 = vmatprep.subr.bf16.mxu0 0
  %401 = vmatpush1.bf16.msra.mxu0 %v346
  %402 = vmatprep.subr.bf16.mxu0 0
  %403 = vmatpush1.bf16.msra.mxu0 0
  %404 = vmatprep.subr.bf16.mxu0 0
  %405 = vmatpush1.bf16.msra.mxu0 0
  %406 = vmatprep.subr.bf16.mxu0 0
  %407 = vmatpush1.bf16.msra.mxu0 0
  %408 = vmatprep.subr.bf16.mxu0 0
  %409 = vmatpush1.bf16.msra.mxu0 0
  %410 = vmatprep.subr.bf16.mxu0 0
  %411 = vmatpush1.bf16.msra.mxu0 0
  %412 = vmatprep.subr.bf16.mxu0 0
  %413 = vmatpush1.bf16.msra.mxu0 0
  %414 = vmatprep.subr.bf16.mxu0 0
  %415 = vmatpush1.bf16.msra.mxu0 0
  %416 = vmatprep.subr.bf16.mxu0 0
  %417 = vmatpush1.bf16.msra.mxu0 0
  %418 = vmatprep.subr.bf16.mxu0 0
  %419 = vmatpush1.bf16.msra.mxu0 0
  %420 = vmatprep.subr.bf16.mxu0 0
  %421 = vmatpush1.bf16.msra.mxu0 0
  %422 = vmatprep.subr.bf16.mxu0 0
  %423 = vmatpush1.bf16.msra.mxu0 0
  %424 = vmatprep.subr.bf16.mxu0 0
  %425 = vmatpush1.bf16.msra.mxu0 0
  %426 = vmatprep.subr.bf16.mxu0 0
  %427 = vmatpush1.bf16.msra.mxu0 0
  %428 = vmatprep.subr.bf16.mxu0 0
  %429 = vmatpush1.bf16.msra.mxu0 0
  %430 = vmatprep.mubr.bf16.mxu0 0
  %431 = vmatmul.mubr.bf16.gmra.mrb[0].mxu0 %v351
  %v432 = vpop.f32.mrb[0].mxu0
  %v433 = vadd.f32 %v100, %v432
  %v434 = vpop.f32.mrb[0].mxu0
  %v435 = vpop.f32.mrb[0].mxu0
  %v436 = vadd.f32 %v105, %v435
  %v437 = vpop.f32.mrb[0].mxu0
  %438 = vmatprep.mubr.bf16.mxu0 0
  %439 = vmatmul.mubr.bf16.gmra.mrb[0].mxu0 %v354
  %v440 = vpop.f32.mrb[0].mxu0
  %v441 = vadd.f32 %v110, %v440
  %v442 = vpop.f32.mrb[0].mxu0
  %v443 = vpop.f32.mrb[0].mxu0
  %v444 = vadd.f32 %v115, %v443
  %v445 = vpop.f32.mrb[0].mxu0
  %446 = vmatprep.mubr.bf16.mxu0 0
  %447 = vmatmul.mubr.bf16.gmra.mrb[0].mxu0 %v357
  %v448 = vpop.f32.mrb[0].mxu0
  %v449 = vadd.f32 %v120, %v448
  %v450 = vpop.f32.mrb[0].mxu0
  %v451 = vpop.f32.mrb[0].mxu0
  %v452 = vadd.f32 %v125, %v451
  %v453 = vpop.f32.mrb[0].mxu0
  %454 = vmatprep.mubr.bf16.mxu0 0
  %455 = vmatmul.mubr.bf16.gmra.mrb[0].mxu0 %v360
  %v456 = vpop.f32.mrb[0].mxu0
  %v457 = vadd.f32 %v130, %v456
  %v458 = vpop.f32.mrb[0].mxu0
  %v459 = vpop.f32.mrb[0].mxu0
  %v460 = vadd.f32 %v135, %v459
  %v461 = vpop.f32.mrb[0].mxu0
  %462 = vmatprep.mubr.bf16.mxu0 0
  %463 = vmatmul.mubr.bf16.gmra.mrb[0].mxu0 %v363
  %v464 = vpop.f32.mrb[0].mxu0
  %v465 = vadd.f32 %v140, %v464
  %v466 = vpop.f32.mrb[0].mxu0
  %v467 = vpop.f32.mrb[0].mxu0
  %v468 = vadd.f32 %v145, %v467
  %v469 = vpop.f32.mrb[0].mxu0
  %470 = vmatprep.mubr.bf16.mxu0 0
  %471 = vmatmul.mubr.bf16.gmra.mrb[0].mxu0 %v366
  %v472 = vpop.f32.mrb[0].mxu0
  %v473 = vadd.f32 %v150, %v472
  %v474 = vpop.f32.mrb[0].mxu0
  %v475 = vpop.f32.mrb[0].mxu0
  %v476 = vadd.f32 %v155, %v475
  %v477 = vpop.f32.mrb[0].mxu0
  %478 = vmatprep.mubr.bf16.mxu0 0
  %479 = vmatmul.mubr.bf16.gmra.mrb[0].mxu0 %v369
  %v480 = vpop.f32.mrb[0].mxu0
  %v481 = vadd.f32 %v160, %v480
  %v482 = vpop.f32.mrb[0].mxu0
  %v483 = vpop.f32.mrb[0].mxu0
  %v484 = vadd.f32 %v165, %v483
  %v485 = vpop.f32.mrb[0].mxu0
  %486 = vmatprep.mubr.bf16.mxu0 0
  %487 = vmatmul.mubr.bf16.gmra.mrb[0].mxu0 %v372
  %v488 = vpop.f32.mrb[0].mxu0
  %v489 = vadd.f32 %v170, %v488
  %v490 = vpop.f32.mrb[0].mxu0
  %v491 = vpop.f32.mrb[0].mxu0
  %v492 = vadd.f32 %v175, %v491
  %v493 = vpop.f32.mrb[0].mxu0
  %494 = vmatprep.mubr.bf16.mxu0 0
  %495 = vmatmul.mubr.bf16.gmra.mrb[0].mxu0 %v375
  %v496 = vpop.f32.mrb[0].mxu0
  %v497 = vadd.f32 %v180, %v496
  %v498 = vpop.f32.mrb[0].mxu0
  %v499 = vpop.f32.mrb[0].mxu0
  %v500 = vadd.f32 %v185, %v499
  %v501 = vpop.f32.mrb[0].mxu0
  %502 = vmatprep.mubr.bf16.mxu0 0
  %503 = vmatmul.mubr.bf16.gmra.mrb[0].mxu0 %v378
  %v504 = vpop.f32.mrb[0].mxu0
  %v505 = vadd.f32 %v190, %v504
  %v506 = vpop.f32.mrb[0].mxu0
  %v507 = vpop.f32.mrb[0].mxu0
  %v508 = vadd.f32 %v195, %v507
  %v509 = vpop.f32.mrb[0].mxu0
  %510 = vmatprep.mubr.bf16.mxu0 0
  %511 = vmatmul.mubr.bf16.gmra.mrb[0].mxu0 %v381
  %v512 = vpop.f32.mrb[0].mxu0
  %v513 = vadd.f32 %v200, %v512
  %v514 = vpop.f32.mrb[0].mxu0
  %v515 = vpop.f32.mrb[0].mxu0
  %v516 = vadd.f32 %v205, %v515
  %v517 = vpop.f32.mrb[0].mxu0
  %518 = vmatprep.mubr.bf16.mxu0 0
  %519 = vmatmul.mubr.bf16.gmra.mrb[0].mxu0 %v384
  %v520 = vpop.f32.mrb[0].mxu0
  %v521 = vadd.f32 %v210, %v520
  %v522 = vpop.f32.mrb[0].mxu0
  %v523 = vpop.f32.mrb[0].mxu0
  %v524 = vadd.f32 %v215, %v523
  %v525 = vpop.f32.mrb[0].mxu0
  %526 = vmatprep.mubr.bf16.mxu0 0
  %527 = vmatmul.mubr.bf16.gmra.mrb[0].mxu0 %v387
  %v528 = vpop.f32.mrb[0].mxu0
  %v529 = vadd.f32 %v220, %v528
  %v530 = vpop.f32.mrb[0].mxu0
  %v531 = vpop.f32.mrb[0].mxu0
  %v532 = vadd.f32 %v225, %v531
  %v533 = vpop.f32.mrb[0].mxu0
  %534 = vmatprep.mubr.bf16.mxu0 0
  %535 = vmatmul.mubr.bf16.gmra.mrb[0].mxu0 %v390
  %v536 = vpop.f32.mrb[0].mxu0
  %v537 = vadd.f32 %v230, %v536
  %v538 = vpop.f32.mrb[0].mxu0
  %v539 = vpop.f32.mrb[0].mxu0
  %v540 = vadd.f32 %v235, %v539
  %v541 = vpop.f32.mrb[0].mxu0
  %542 = vmatprep.mubr.bf16.mxu0 0
  %543 = vmatmul.mubr.bf16.gmra.mrb[0].mxu0 %v393
  %v544 = vpop.f32.mrb[0].mxu0
  %v545 = vadd.f32 %v240, %v544
  %v546 = vpop.f32.mrb[0].mxu0
  %v547 = vpop.f32.mrb[0].mxu0
  %v548 = vadd.f32 %v245, %v547
  %v549 = vpop.f32.mrb[0].mxu0
  %550 = vmatprep.mubr.bf16.mxu0 0
  %551 = vmatmul.mubr.bf16.gmra.mrb[0].mxu0 %v396
  %v552 = vpop.f32.mrb[0].mxu0
  %v553 = vadd.f32 %v250, %v552
  %v554 = vpop.f32.mrb[0].mxu0
  %v555 = vpop.f32.mrb[0].mxu0
  %v556 = vadd.f32 %v255, %v555
  %v557 = vpop.f32.mrb[0].mxu0
  %558 = vdwg.mxu0
  %v559 = vmax.f32 %v433, 0.0
  %v560 = vmax.f32 %v436, 0.0
  %v561 = vmax.f32 %v441, 0.0
  %v562 = vmax.f32 %v444, 0.0
  %v563 = vmax.f32 %v449, 0.0
  %v564 = vmax.f32 %v452, 0.0
  %v565 = vmax.f32 %v457, 0.0
  %v566 = vmax.f32 %v460, 0.0
  %v567 = vmax.f32 %v465, 0.0
  %v568 = vmax.f32 %v468, 0.0
  %v569 = vmax.f32 %v473, 0.0
  %v570 = vmax.f32 %v476, 0.0
  %v571 = vmax.f32 %v481, 0.0
  %v572 = vmax.f32 %v484, 0.0
  %v573 = vmax.f32 %v489, 0.0
  %v574 = vmax.f32 %v492, 0.0
  %v575 = vmax.f32 %v497, 0.0
  %v576 = vmax.f32 %v500, 0.0
  %v577 = vmax.f32 %v505, 0.0
  %v578 = vmax.f32 %v508, 0.0
  %v579 = vmax.f32 %v513, 0.0
  %v580 = vmax.f32 %v516, 0.0
  %v581 = vmax.f32 %v521, 0.0
  %v582 = vmax.f32 %v524, 0.0
  %v583 = vmax.f32 %v529, 0.0
  %v584 = vmax.f32 %v532, 0.0
  %v585 = vmax.f32 %v537, 0.0
  %v586 = vmax.f32 %v540, 0.0
  %v587 = vmax.f32 %v545, 0.0
  %v588 = vmax.f32 %v548, 0.0
  %v589 = vmax.f32 %v553, 0.0
  %v590 = vmax.f32 %v556, 0.0
  %v591 = vpack.c.bf16 %v560, %v559
  %v592 = vpack.c.bf16 %v562, %v561
  %v593 = vpack.c.bf16 %v564, %v563
  %v594 = vpack.c.bf16 %v566, %v565
  %v595 = vpack.c.bf16 %v568, %v567
  %v596 = vpack.c.bf16 %v570, %v569
  %v597 = vpack.c.bf16 %v572, %v571
  %v598 = vpack.c.bf16 %v574, %v573
  %v599 = vpack.c.bf16 %v576, %v575
  %v600 = vpack.c.bf16 %v578, %v577
  %v601 = vpack.c.bf16 %v580, %v579
  %v602 = vpack.c.bf16 %v582, %v581
  %v603 = vpack.c.bf16 %v584, %v583
  %v604 = vpack.c.bf16 %v586, %v585
  %v605 = vpack.c.bf16 %v588, %v587
  %v606 = vpack.c.bf16 %v590, %v589
  %v607 = vld [vmem:[%s3] sm:$0xff]
  %v608 = vld [vmem:[%s3 + $0x8] sm:$0xff]
  %v609 = vld [vmem:[%s3 + $0x10] sm:$0xff]
  %v610 = vld [vmem:[%s3 + $0x18] sm:$0xff]
  %v611 = vld [vmem:[%s3 + $0x20] sm:$0xff]
  %v612 = vld [vmem:[%s3 + $0x28] sm:$0xff]
  %v613 = vld [vmem:[%s3 + $0x30] sm:$0xff]
  %v614 = vld [vmem:[%s3 + $0x38] sm:$0xff]
  %v615 = vld [vmem:[%s3 + $0x40] sm:$0xff]
  %v616 = vld [vmem:[%s3 + $0x48] sm:$0xff]
  %v617 = vld [vmem:[%s3 + $0x50] sm:$0xff]
  %v618 = vld [vmem:[%s3 + $0x58] sm:$0xff]
  %v619 = vld [vmem:[%s3 + $0x60] sm:$0xff]
  %v620 = vld [vmem:[%s3 + $0x68] sm:$0xff]
  %v621 = vld [vmem:[%s3 + $0x70] sm:$0xff]
  %v622 = vld [vmem:[%s3 + $0x78] sm:$0xff]
  %v623 = vld [vmem:[%s4] sm:$0xff]
  %v624 = vld [vmem:[%s4 + $0x8] sm:$0xff]
  %v625 = vld [vmem:[%s4 + $0x10] sm:$0xff]
  %v626 = vld [vmem:[%s4 + $0x18] sm:$0xff]
  %v627 = vld [vmem:[%s4 + $0x20] sm:$0xff]
  %v628 = vld [vmem:[%s4 + $0x28] sm:$0xff]
  %v629 = vld [vmem:[%s4 + $0x30] sm:$0xff]
  %v630 = vld [vmem:[%s4 + $0x38] sm:$0xff]
  %v631 = vld [vmem:[%s4 + $0x40] sm:$0xff]
  %v632 = vld [vmem:[%s4 + $0x48] sm:$0xff]
  %v633 = vld [vmem:[%s4 + $0x50] sm:$0xff]
  %v634 = vld [vmem:[%s4 + $0x58] sm:$0xff]
  %v635 = vld [vmem:[%s4 + $0x60] sm:$0xff]
  %v636 = vld [vmem:[%s4 + $0x68] sm:$0xff]
  %v637 = vld [vmem:[%s4 + $0x70] sm:$0xff]
  %v638 = vld [vmem:[%s4 + $0x78] sm:$0xff]
  %640 = vset.pattern.permute.xlu0 0
  %641 = vperm.xlu0 %640, %v623
  %v642 = vpop.permute.xlu0 %641
  %645 = vset.pattern.permute.xlu0 0
  %646 = vperm.xlu0 %645, %v624
  %v647 = vpop.permute.xlu0 %646
  %650 = vset.pattern.permute.xlu0 0
  %651 = vperm.xlu0 %650, %v625
  %v652 = vpop.permute.xlu0 %651
  %655 = vset.pattern.permute.xlu0 0
  %656 = vperm.xlu0 %655, %v626
  %v657 = vpop.permute.xlu0 %656
  %660 = vset.pattern.permute.xlu0 0
  %661 = vperm.xlu0 %660, %v627
  %v662 = vpop.permute.xlu0 %661
  %665 = vset.pattern.permute.xlu0 0
  %666 = vperm.xlu0 %665, %v628
  %v667 = vpop.permute.xlu0 %666
  %670 = vset.pattern.permute.xlu0 0
  %671 = vperm.xlu0 %670, %v629
  %v672 = vpop.permute.xlu0 %671
  %675 = vset.pattern.permute.xlu0 0
  %676 = vperm.xlu0 %675, %v630
  %v677 = vpop.permute.xlu0 %676
  %680 = vset.pattern.permute.xlu0 0
  %681 = vperm.xlu0 %680, %v631
  %v682 = vpop.permute.xlu0 %681
  %685 = vset.pattern.permute.xlu0 0
  %686 = vperm.xlu0 %685, %v632
  %v687 = vpop.permute.xlu0 %686
  %690 = vset.pattern.permute.xlu0 0
  %691 = vperm.xlu0 %690, %v633
  %v692 = vpop.permute.xlu0 %691
  %695 = vset.pattern.permute.xlu0 0
  %696 = vperm.xlu0 %695, %v634
  %v697 = vpop.permute.xlu0 %696
  %700 = vset.pattern.permute.xlu0 0
  %701 = vperm.xlu0 %700, %v635
  %v702 = vpop.permute.xlu0 %701
  %705 = vset.pattern.permute.xlu0 0
  %706 = vperm.xlu0 %705, %v636
  %v707 = vpop.permute.xlu0 %706
  %710 = vset.pattern.permute.xlu0 0
  %711 = vperm.xlu0 %710, %v637
  %v712 = vpop.permute.xlu0 %711
  %715 = vset.pattern.permute.xlu0 0
  %716 = vperm.xlu0 %715, %v638
  %v717 = vpop.permute.xlu0 %716
  %v735 = vunpack.c.l.b16 %v607
  %v736 = vunpack.c.h.b16 %v607
  %v737 = vunpack.c.l.b16 %v608
  %v738 = vunpack.c.h.b16 %v608
  %v739 = vunpack.c.l.b16 %v609
  %v740 = vunpack.c.h.b16 %v609
  %v741 = vunpack.c.l.b16 %v610
  %v742 = vunpack.c.h.b16 %v610
  %v743 = vunpack.c.l.b16 %v611
  %v744 = vunpack.c.h.b16 %v611
  %v745 = vunpack.c.l.b16 %v612
  %v746 = vunpack.c.h.b16 %v612
  %v747 = vunpack.c.l.b16 %v613
  %v748 = vunpack.c.h.b16 %v613
  %v749 = vunpack.c.l.b16 %v614
  %v750 = vunpack.c.h.b16 %v614
  %v751 = vunpack.c.l.b16 %v615
  %v752 = vunpack.c.h.b16 %v615
  %v753 = vunpack.c.l.b16 %v616
  %v754 = vunpack.c.h.b16 %v616
  %v755 = vunpack.c.l.b16 %v617
  %v756 = vunpack.c.h.b16 %v617
  %v757 = vunpack.c.l.b16 %v618
  %v758 = vunpack.c.h.b16 %v618
  %v759 = vunpack.c.l.b16 %v619
  %v760 = vunpack.c.h.b16 %v619
  %v761 = vunpack.c.l.b16 %v620
  %v762 = vunpack.c.h.b16 %v620
  %v763 = vunpack.c.l.b16 %v621
  %v764 = vunpack.c.h.b16 %v621
  %v765 = vunpack.c.l.b16 %v622
  %v766 = vunpack.c.h.b16 %v622
  %v767 = vpack.c.b16 %v737, %v735
  %v768 = vpack.c.b16 %v738, %v736
  %v769 = vpack.c.b16 %v741, %v739
  %v770 = vpack.c.b16 %v742, %v740
  %v771 = vpack.c.b16 %v745, %v743
  %v772 = vpack.c.b16 %v746, %v744
  %v773 = vpack.c.b16 %v749, %v747
  %v774 = vpack.c.b16 %v750, %v748
  %v775 = vpack.c.b16 %v753, %v751
  %v776 = vpack.c.b16 %v754, %v752
  %v777 = vpack.c.b16 %v757, %v755
  %v778 = vpack.c.b16 %v758, %v756
  %v779 = vpack.c.b16 %v761, %v759
  %v780 = vpack.c.b16 %v762, %v760
  %v781 = vpack.c.b16 %v765, %v763
  %v782 = vpack.c.b16 %v766, %v764
  %799 = vmatprep.subr.bf16.mxu0 0
  %800 = vmatpush1.bf16.msra.mxu0 %v591
  %801 = vmatprep.subr.bf16.mxu0 0
  %802 = vmatpush1.bf16.msra.mxu0 %v592
  %803 = vmatprep.subr.bf16.mxu0 0
  %804 = vmatpush1.bf16.msra.mxu0 %v593
  %805 = vmatprep.subr.bf16.mxu0 0
  %806 = vmatpush1.bf16.msra.mxu0 %v594
  %807 = vmatprep.subr.bf16.mxu0 0
  %808 = vmatpush1.bf16.msra.mxu0 %v595
  %809 = vmatprep.subr.bf16.mxu0 0
  %810 = vmatpush1.bf16.msra.mxu0 %v596
  %811 = vmatprep.subr.bf16.mxu0 0
  %812 = vmatpush1.bf16.msra.mxu0 %v597
  %813 = vmatprep.subr.bf16.mxu0 0
  %814 = vmatpush1.bf16.msra.mxu0 %v598
  %815 = vmatprep.subr.bf16.mxu0 0
  %816 = vmatpush1.bf16.msra.mxu0 %v599
  %817 = vmatprep.subr.bf16.mxu0 0
  %818 = vmatpush1.bf16.msra.mxu0 %v600
  %819 = vmatprep.subr.bf16.mxu0 0
  %820 = vmatpush1.bf16.msra.mxu0 %v601
  %821 = vmatprep.subr.bf16.mxu0 0
  %822 = vmatpush1.bf16.msra.mxu0 %v602
  %823 = vmatprep.subr.bf16.mxu0 0
  %824 = vmatpush1.bf16.msra.mxu0 %v603
  %825 = vmatprep.subr.bf16.mxu0 0
  %826 = vmatpush1.bf16.msra.mxu0 %v604
  %827 = vmatprep.subr.bf16.mxu0 0
  %828 = vmatpush1.bf16.msra.mxu0 %v605
  %829 = vmatprep.subr.bf16.mxu0 0
  %830 = vmatpush1.bf16.msra.mxu0 %v606
  %831 = vmatprep.mubr.bf16.mxu0 %v768
  %832 = vmatmul.mubr.bf16.gmra.mrb[0].mxu0 %v767
  %v833 = vpop.f32.mrb[0].mxu0
  %v834 = vadd.f32 %v642, %v833
  %v835 = vpop.f32.mrb[0].mxu0
  %v836 = vpop.f32.mrb[0].mxu0
  %v837 = vadd.f32 %v647, %v836
  %v838 = vpop.f32.mrb[0].mxu0
  %839 = vmatprep.mubr.bf16.mxu0 %v770
  %840 = vmatmul.mubr.bf16.gmra.mrb[0].mxu0 %v769
  %v841 = vpop.f32.mrb[0].mxu0
  %v842 = vadd.f32 %v652, %v841
  %v843 = vpop.f32.mrb[0].mxu0
  %v844 = vpop.f32.mrb[0].mxu0
  %v845 = vadd.f32 %v657, %v844
  %v846 = vpop.f32.mrb[0].mxu0
  %847 = vmatprep.mubr.bf16.mxu0 %v772
  %848 = vmatmul.mubr.bf16.gmra.mrb[0].mxu0 %v771
  %v849 = vpop.f32.mrb[0].mxu0
  %v850 = vadd.f32 %v662, %v849
  %v851 = vpop.f32.mrb[0].mxu0
  %v852 = vpop.f32.mrb[0].mxu0
  %v853 = vadd.f32 %v667, %v852
  %v854 = vpop.f32.mrb[0].mxu0
  %855 = vmatprep.mubr.bf16.mxu0 %v774
  %856 = vmatmul.mubr.bf16.gmra.mrb[0].mxu0 %v773
  %v857 = vpop.f32.mrb[0].mxu0
  %v858 = vadd.f32 %v672, %v857
  %v859 = vpop.f32.mrb[0].mxu0
  %v860 = vpop.f32.mrb[0].mxu0
  %v861 = vadd.f32 %v677, %v860
  %v862 = vpop.f32.mrb[0].mxu0
  %863 = vmatprep.mubr.bf16.mxu0 %v776
  %864 = vmatmul.mubr.bf16.gmra.mrb[0].mxu0 %v775
  %v865 = vpop.f32.mrb[0].mxu0
  %v866 = vadd.f32 %v682, %v865
  %v867 = vpop.f32.mrb[0].mxu0
  %v868 = vpop.f32.mrb[0].mxu0
  %v869 = vadd.f32 %v687, %v868
  %v870 = vpop.f32.mrb[0].mxu0
  %871 = vmatprep.mubr.bf16.mxu0 %v778
  %872 = vmatmul.mubr.bf16.gmra.mrb[0].mxu0 %v777
  %v873 = vpop.f32.mrb[0].mxu0
  %v874 = vadd.f32 %v692, %v873
  %v875 = vpop.f32.mrb[0].mxu0
  %v876 = vpop.f32.mrb[0].mxu0
  %v877 = vadd.f32 %v697, %v876
  %v878 = vpop.f32.mrb[0].mxu0
  %879 = vmatprep.mubr.bf16.mxu0 %v780
  %880 = vmatmul.mubr.bf16.gmra.mrb[0].mxu0 %v779
  %v881 = vpop.f32.mrb[0].mxu0
  %v882 = vadd.f32 %v702, %v881
  %v883 = vpop.f32.mrb[0].mxu0
  %v884 = vpop.f32.mrb[0].mxu0
  %v885 = vadd.f32 %v707, %v884
  %v886 = vpop.f32.mrb[0].mxu0
  %887 = vmatprep.mubr.bf16.mxu0 %v782
  %888 = vmatmul.mubr.bf16.gmra.mrb[0].mxu0 %v781
  %v889 = vpop.f32.mrb[0].mxu0
  %v890 = vadd.f32 %v712, %v889
  %v891 = vpop.f32.mrb[0].mxu0
  %v892 = vpop.f32.mrb[0].mxu0
  %v893 = vadd.f32 %v717, %v892
  %v894 = vpop.f32.mrb[0].mxu0
  %895 = vdwg.mxu0
  %v896 = vmax.f32 %v834, 0.0
  %v897 = vmax.f32 %v837, 0.0
  %v898 = vmax.f32 %v842, 0.0
  %v899 = vmax.f32 %v845, 0.0
  %v900 = vmax.f32 %v850, 0.0
  %v901 = vmax.f32 %v853, 0.0
  %v902 = vmax.f32 %v858, 0.0
  %v903 = vmax.f32 %v861, 0.0
  %v904 = vmax.f32 %v866, 0.0
  %v905 = vmax.f32 %v869, 0.0
  %v906 = vmax.f32 %v874, 0.0
  %v907 = vmax.f32 %v877, 0.0
  %v908 = vmax.f32 %v882, 0.0
  %v909 = vmax.f32 %v885, 0.0
  %v910 = vmax.f32 %v890, 0.0
  %v911 = vmax.f32 %v893, 0.0
  %v912 = vld [vmem:[%s5] sm:$0xff]
  %v913 = vld [vmem:[%s5 + $0x8] sm:$0xff]
  %v914 = vld [vmem:[%s5 + $0x10] sm:$0xff]
  %v915 = vld [vmem:[%s5 + $0x18] sm:$0xff]
  %v916 = vld [vmem:[%s5 + $0x20] sm:$0xff]
  %v917 = vld [vmem:[%s5 + $0x28] sm:$0xff]
  %v918 = vld [vmem:[%s5 + $0x30] sm:$0xff]
  %v919 = vld [vmem:[%s5 + $0x38] sm:$0xff]
  %v920 = vld [vmem:[%s5 + $0x40] sm:$0xff]
  %v921 = vld [vmem:[%s5 + $0x48] sm:$0xff]
  %v922 = vld [vmem:[%s5 + $0x50] sm:$0xff]
  %v923 = vld [vmem:[%s5 + $0x58] sm:$0xff]
  %v924 = vld [vmem:[%s5 + $0x60] sm:$0xff]
  %v925 = vld [vmem:[%s5 + $0x68] sm:$0xff]
  %v926 = vld [vmem:[%s5 + $0x70] sm:$0xff]
  %v927 = vld [vmem:[%s5 + $0x78] sm:$0xff]
  %929 = vset.pattern.permute.xlu0 0
  %930 = vperm.xlu0 %929, %v912
  %v931 = vpop.permute.xlu0 %930
  %934 = vset.pattern.permute.xlu0 0
  %935 = vperm.xlu0 %934, %v913
  %v936 = vpop.permute.xlu0 %935
  %939 = vset.pattern.permute.xlu0 0
  %940 = vperm.xlu0 %939, %v914
  %v941 = vpop.permute.xlu0 %940
  %944 = vset.pattern.permute.xlu0 0
  %945 = vperm.xlu0 %944, %v915
  %v946 = vpop.permute.xlu0 %945
  %949 = vset.pattern.permute.xlu0 0
  %950 = vperm.xlu0 %949, %v916
  %v951 = vpop.permute.xlu0 %950
  %954 = vset.pattern.permute.xlu0 0
  %955 = vperm.xlu0 %954, %v917
  %v956 = vpop.permute.xlu0 %955
  %959 = vset.pattern.permute.xlu0 0
  %960 = vperm.xlu0 %959, %v918
  %v961 = vpop.permute.xlu0 %960
  %964 = vset.pattern.permute.xlu0 0
  %965 = vperm.xlu0 %964, %v919
  %v966 = vpop.permute.xlu0 %965
  %969 = vset.pattern.permute.xlu0 0
  %970 = vperm.xlu0 %969, %v920
  %v971 = vpop.permute.xlu0 %970
  %974 = vset.pattern.permute.xlu0 0
  %975 = vperm.xlu0 %974, %v921
  %v976 = vpop.permute.xlu0 %975
  %979 = vset.pattern.permute.xlu0 0
  %980 = vperm.xlu0 %979, %v922
  %v981 = vpop.permute.xlu0 %980
  %984 = vset.pattern.permute.xlu0 0
  %985 = vperm.xlu0 %984, %v923
  %v986 = vpop.permute.xlu0 %985
  %989 = vset.pattern.permute.xlu0 0
  %990 = vperm.xlu0 %989, %v924
  %v991 = vpop.permute.xlu0 %990
  %994 = vset.pattern.permute.xlu0 0
  %995 = vperm.xlu0 %994, %v925
  %v996 = vpop.permute.xlu0 %995
  %999 = vset.pattern.permute.xlu0 0
  %1000 = vperm.xlu0 %999, %v926
  %v1001 = vpop.permute.xlu0 %1000
  %1004 = vset.pattern.permute.xlu0 0
  %1005 = vperm.xlu0 %1004, %v927
  %v1006 = vpop.permute.xlu0 %1005
  %v1008 = vmul.f32 %v896, %v931
  %v1009 = vmul.f32 %v897, %v936
  %v1010 = vmul.f32 %v898, %v941
  %v1011 = vmul.f32 %v899, %v946
  %v1012 = vmul.f32 %v900, %v951
  %v1013 = vmul.f32 %v901, %v956
  %v1014 = vmul.f32 %v902, %v961
  %v1015 = vmul.f32 %v903, %v966
  %v1016 = vmul.f32 %v904, %v971
  %v1017 = vmul.f32 %v905, %v976
  %v1018 = vmul.f32 %v906, %v981
  %v1019 = vmul.f32 %v907, %v986
  %v1020 = vmul.f32 %v908, %v991
  %v1021 = vmul.f32 %v909, %v996
  %v1022 = vmul.f32 %v910, %v1001
  %v1023 = vmul.f32 %v911, %v1006
  %v1024 = vadd.f32 %v1008, %v1009
  %v1025 = vadd.f32 %v1024, %v1010
  %v1026 = vadd.f32 %v1025, %v1011
  %v1027 = vadd.f32 %v1026, %v1012
  %v1028 = vadd.f32 %v1027, %v1013
  %v1029 = vadd.f32 %v1028, %v1014
  %v1030 = vadd.f32 %v1029, %v1015
  %v1031 = vadd.f32 %v1030, %v1016
  %v1032 = vadd.f32 %v1031, %v1017
  %v1033 = vadd.f32 %v1032, %v1018
  %v1034 = vadd.f32 %v1033, %v1019
  %v1035 = vadd.f32 %v1034, %v1020
  %v1036 = vadd.f32 %v1035, %v1021
  %v1037 = vadd.f32 %v1036, %v1022
  %v1038 = vadd.f32 %v1037, %v1023
  %v1039 = vrot.slane %v1038, 4
  %v1040 = vadd.f32 %v1038, %v1039
  %v1041 = vrot.slane %v1040, 2
  %v1042 = vadd.f32 %v1040, %v1041
  %v1043 = vrot.slane %v1042, 1
  %v1044 = vadd.f32 %v1042, %v1043
  %v1045 = vld [vmem:[#allocation2] sm:$0x1]
  %1047 = vset.pattern.permute.xlu0 0
  %1048 = vperm.xlu0 %1047, %v1045
  %v1049 = vpop.permute.xlu0 %1048
  %v1051 = vlaneseq
  %v1052 = vshrl.u32 %v1051, 7
  %v1053 = vsub.s32 0, %v1052
  %v1054 = vrot.slane %v1049, %v1053
  %v1055 = vadd.f32 %v1044, %v1054
  %v1056 = vxor.u32 %v1055, 2147483648
  %v1057 = vmul.f32 %v1056, 1.442695
  %v1058 = vpow.pop %v1057
  %v1059 = vadd.f32 %v1058, 1.0
  %v1060 = vrcp.pop %v1059
  %v1061 = vmul.f32 1.0, %v1060
  %1062 = vst [vmem:[%s7] sm:$0x1] %v1061
  // Predicated region
  $region30: #{mapper_forward.1} parent=0 // pred_check
    _
  $region31: #{mapper_forward.1} parent=0 // pred_check_branch
    %1064 = sbr.rel (0) target = $region33
  $region32: #{mapper_forward.1} parent=0 // pred_region
    _
  $region33: #{mapper_forward.1} parent=0 // pred_fallthru
    _
  // Predicated region
  $region34: #{mapper_forward.1} parent=0 // pred_check
    _
  $region35: #{mapper_forward.1} parent=0 // pred_check_branch
    %1066 = sbr.rel (0) target = $region37
  $region36: #{mapper_forward.1} parent=0 // pred_region
    _
  $region37: #{mapper_forward.1} parent=0 // pred_fallthru
    _

</llo_original>
